<compile_context>
chip_gen: v7x
topology: tpu7x:2x2x1
jax: 0.10.0
libtpu: 0.0.40
codegen_flags: <defaults>
</compile_context>

<pallas_src>
import functools
import math

import jax
import jax.numpy as jnp
from jax import lax
from jax.experimental import pallas as pl
from jax.experimental.pallas import tpu as pltpu

H = 32  # hidden width fixed by the module
LOG_2PI = math.log(2.0 * math.pi)


def _actor_kernel(x_ref, at_ref, eps_ref, we1_ref, w_ref, b_ref, out_ref, *,
                  action_min, action_max):
    f32, bf16 = jnp.float32, jnp.bfloat16
    n = at_ref.shape[0]

    def b_row(i):                       # (1, H) bias row, broadcasts over nodes
        return b_ref[i:i + 1, :]

    def mm(x, w_bf16):                  # bf16 MXU matmul, f32 accumulation
        return jnp.dot(x.astype(bf16), w_bf16, preferred_element_type=f32)

    # --- encoder_1 -> relu -> encoder_2 -> relu ---
    X = jnp.maximum(mm(x_ref[...], we1_ref[...]) + b_row(0), 0.0)
    X = jnp.maximum(mm(X, w_ref[0:H, :]) + b_row(1), 0.0)

    # --- GCNConv(32, 32): out = D^-1/2 A_hat^T D^-1/2 (X Wg) + bg ---
    A_T = at_ref[...]                                            # pre-transposed adjacency
    rows = lax.broadcasted_iota(jnp.int32, (n, n), 0)
    cols = lax.broadcasted_iota(jnp.int32, (n, n), 1)
    # binarize (dense_to_sparse, unit weights) + add_remaining_self_loops in one where
    a_hat_t = jnp.where(jnp.logical_or(rows == cols, A_T != 0.0), 1.0, 0.0)
    deg = jnp.sum(a_hat_t, axis=-1, keepdims=True)               # (N, 1) lane reduction
    d_inv_sqrt = lax.rsqrt(deg)                                  # self-loops => deg >= 1

    Xg = mm(X, w_ref[H:2 * H, :]) * d_inv_sqrt                   # scale source nodes
    Xg = jnp.dot(a_hat_t.astype(bf16), Xg.astype(bf16),
                 preferred_element_type=f32)                     # aggregate at target nodes
    Xg = jnp.maximum(Xg * d_inv_sqrt + b_row(2), 0.0)

    # --- GraphConv_Dense -> relu ---
    Xg = jnp.maximum(mm(Xg, w_ref[2 * H:3 * H, :]) + b_row(3), 0.0)

    # --- policy_1(concat([X_graph, X])) -> relu -> policy_2 -> relu ---
    P = jnp.concatenate([Xg, X], axis=-1)                        # (N, 64) lane concat
    P = jnp.maximum(mm(P, w_ref[3 * H:5 * H, :]) + b_row(4), 0.0)
    P = jnp.maximum(mm(P, w_ref[5 * H:6 * H, :]) + b_row(5), 0.0)

    # --- mu / sigma heads (outputs zero-padded to H lanes; real actions in lanes [0:A]) ---
    mu = mm(P, w_ref[6 * H:7 * H, :]) + b_row(6)
    log_sigma = mm(P, w_ref[7 * H:8 * H, :]) + b_row(7)
    sigma = jnp.exp(log_sigma)

    # --- Normal(mu, sigma): reparameterized sample, log_prob, clamp ---
    eps = eps_ref[...]                                           # standard normal (padded)
    action_raw = mu + sigma * eps
    log_prob = -0.5 * eps * eps - log_sigma - 0.5 * LOG_2PI
    action = jnp.clip(action_raw, action_min, action_max)

    # packed lane-dense output: [action | log_prob | mu | sigma], each H lanes wide
    out_ref[...] = jnp.concatenate([action, log_prob, mu, sigma], axis=-1)


def graph_actor_forward(X_in, A_dense, RL_indice, noise, params,
                        action_min=-1.0, action_max=1.0):
    """Batched actor forward.

    X_in: (B, N, F) node features; A_dense: (B, N, N) dense adjacency;
    noise: (B, N, A) standard-normal samples (reparameterization of Normal.sample()).
    RL_indice is accepted for interface parity with the PyTorch module, but (exactly as in
    the original Graph_Actor_Model.forward) it is not used by the actor.
    params follow PyTorch (out_features, in_features) weight / (out_features,) bias layout.
    Returns (action, log_probs, mu, sigma) each shaped (B, N, A).
    """
    del RL_indice  # unused by the actor forward, mirroring the PyTorch code
    (we1, be1, we2, be2, wg, bg, wgd, bgd,
     wp1, bp1, wp2, bp2, wmu, bmu, wsig, bsig) = params
    B, N, F_dim = X_in.shape
    A_act = wmu.shape[0]
    f32 = jnp.float32

    # ---- pack parameters: one bf16 (8H, H) weight slab + one f32 (8, H) bias slab ----
    w_mu_pad = jnp.zeros((H, H), f32).at[:, :A_act].set(wmu.T)
    w_sig_pad = jnp.zeros((H, H), f32).at[:, :A_act].set(wsig.T)
    b_mu_pad = jnp.zeros((H,), f32).at[:A_act].set(bmu)
    b_sig_pad = jnp.zeros((H,), f32).at[:A_act].set(bsig)

    w_slab = jnp.concatenate(
        [we2.T, wg.T, wgd.T, wp1.T, wp2.T, w_mu_pad, w_sig_pad],
        axis=0).astype(jnp.bfloat16)                              # (8H, H) = (256, 32)
    b_slab = jnp.stack([be1, be2, bg, bgd, bp1, bp2, b_mu_pad, b_sig_pad],
                       axis=0).astype(f32)                        # (8, H)
    we1_t = we1.T.astype(jnp.bfloat16)                            # (F, H)

    A_T = jnp.swapaxes(A_dense.astype(f32), -1, -2)               # per-graph A^T
    eps_pad = jnp.zeros((B, N, H), f32).at[..., :A_act].set(noise.astype(f32))

    kernel = functools.partial(_actor_kernel,
                               action_min=float(action_min),
                               action_max=float(action_max))

    out = pl.pallas_call(
        kernel,
        out_shape=jax.ShapeDtypeStruct((B, N, 4 * H), f32),
        grid=(B,),
        in_specs=[
            pl.BlockSpec((None, N, F_dim), lambda b: (b, 0, 0)),   # X      (per graph)
            pl.BlockSpec((None, N, N),     lambda b: (b, 0, 0)),   # A^T    (per graph)
            pl.BlockSpec((None, N, H),     lambda b: (b, 0, 0)),   # noise  (per graph)
            pl.BlockSpec((F_dim, H),       lambda b: (0, 0)),      # encoder_1 weight
            pl.BlockSpec((8 * H, H),       lambda b: (0, 0)),      # packed weight slab
            pl.BlockSpec((8, H),           lambda b: (0, 0)),      # packed bias slab
        ],
        out_specs=pl.BlockSpec((None, N, 4 * H), lambda b: (b, 0, 0)),
        compiler_params=pltpu.CompilerParams(
            dimension_semantics=("parallel",)),
    )(X_in.astype(f32), A_T, eps_pad, we1_t, w_slab, b_slab)

    action = out[..., 0 * H:0 * H + A_act]
    log_prob = out[..., 1 * H:1 * H + A_act]
    mu = out[..., 2 * H:2 * H + A_act]
    sigma = out[..., 3 * H:3 * H + A_act]
    return action, log_prob, mu, sigma


def _linear_init(key, out_d, in_d):
    """Deterministic PyTorch-style uniform(-1/sqrt(in), 1/sqrt(in)) init."""
    kw, kb = jax.random.split(key)
    bound = 1.0 / math.sqrt(in_d)
    w = jax.random.uniform(kw, (out_d, in_d), jnp.float32, -bound, bound)
    b = jax.random.uniform(kb, (out_d,), jnp.float32, -bound, bound)
    return w, b


def _reference_forward(X_in, A_dense, noise, params, action_min, action_max):
    """Pure-JAX f32 reference mirroring the PyTorch actor forward (single graph)."""
    (we1, be1, we2, be2, wg, bg, wgd, bgd,
     wp1, bp1, wp2, bp2, wmu, bmu, wsig, bsig) = params
    N = X_in.shape[0]
    relu = lambda t: jnp.maximum(t, 0.0)
    X = relu(X_in @ we1.T + be1)
    X = relu(X @ we2.T + be2)
    a_bin = (A_dense != 0.0).astype(jnp.float32)
    a_hat = jnp.where(jnp.eye(N, dtype=bool), 1.0, a_bin)
    d_inv = 1.0 / jnp.sqrt(jnp.sum(a_hat, axis=0))
    Xg = X @ wg.T
    Xg = d_inv[:, None] * (a_hat.T @ (d_inv[:, None] * Xg)) + bg
    Xg = relu(Xg)
    Xg = relu(Xg @ wgd.T + bgd)
    P = relu(jnp.concatenate([Xg, X], axis=1) @ wp1.T + bp1)
    P = relu(P @ wp2.T + bp2)
    mu = P @ wmu.T + bmu
    sigma = jnp.exp(P @ wsig.T + bsig)
    action_raw = mu + sigma * noise
    log_prob = (-0.5 * jnp.square((action_raw - mu) / sigma)
                - jnp.log(sigma) - 0.5 * math.log(2.0 * math.pi))
    action = jnp.clip(action_raw, action_min, action_max)
    return action, log_prob, mu, sigma


if __name__ == "__main__":
    B, N, F_dim, A_act = 4, 8, 16, 2       # B graphs, N vehicles, F features, A actions
    action_min, action_max = -1.0, 1.0

    key = jax.random.PRNGKey(0)
    k = jax.random.split(key, 12)

    we1, be1 = _linear_init(k[0], 32, F_dim)     # encoder_1: F -> 32
    we2, be2 = _linear_init(k[1], 32, 32)        # encoder_2
    wg, bg = _linear_init(k[2], 32, 32)          # GCNConv lin + bias
    wgd, bgd = _linear_init(k[3], 32, 32)        # GraphConv_Dense
    wp1, bp1 = _linear_init(k[4], 32, 64)        # policy_1: 64 -> 32
    wp2, bp2 = _linear_init(k[5], 32, 32)        # policy_2
    wmu, bmu = _linear_init(k[6], A_act, 32)     # mu head
    wsig, bsig = _linear_init(k[7], A_act, 32)   # sigma head (pre-exp)
    params = (we1, be1, we2, be2, wg, bg, wgd, bgd,
              wp1, bp1, wp2, bp2, wmu, bmu, wsig, bsig)

    X_in = jax.random.normal(k[8], (B, N, F_dim), jnp.float32)
    A_dense = (jax.random.uniform(k[9], (B, N, N)) > 0.6).astype(jnp.float32)
    RL_indice = (jax.random.uniform(k[10], (B, N)) > 0.5).astype(jnp.float32)
    noise = jax.random.normal(k[11], (B, N, A_act), jnp.float32)

    # One fused XLA program: slab packing + pallas kernel + output slicing, single dispatch.
    actor_fwd = jax.jit(graph_actor_forward, static_argnums=(5, 6))
    action, log_prob, mu, sigma = actor_fwd(
        X_in, A_dense, RL_indice, noise, params, action_min, action_max)
    action, log_prob, mu, sigma = jax.block_until_ready((action, log_prob, mu, sigma))

    ref_a, ref_lp, ref_mu, ref_sig = jax.vmap(
        lambda x, a, e: _reference_forward(x, a, e, params, action_min, action_max)
    )(X_in, A_dense, noise)

    tol = dict(atol=5e-2, rtol=5e-2)      # bf16 MXU operands vs f32 reference
    assert action.shape == (B, N, A_act) and log_prob.shape == (B, N, A_act)
    assert bool(jnp.allclose(action, ref_a, **tol))
    assert bool(jnp.allclose(log_prob, ref_lp, **tol))
    assert bool(jnp.allclose(mu, ref_mu, **tol))
    assert bool(jnp.allclose(sigma, ref_sig, **tol))
    print("KERNEL_OK")
</pallas_src>

<mosaic_0001>
module attributes {stable_mosaic.version = 11 : i64} {
  func.func @_actor_kernel(%arg0: i32, %arg1: memref<1x8x16xf32, #tpu.memory_space<vmem>>, %arg2: memref<1x8x8xf32, #tpu.memory_space<vmem>>, %arg3: memref<1x8x32xf32, #tpu.memory_space<vmem>>, %arg4: memref<16x32xbf16, #tpu.memory_space<vmem>>, %arg5: memref<256x32xbf16, #tpu.memory_space<vmem>>, %arg6: memref<8x32xf32, #tpu.memory_space<vmem>>, %arg7: memref<1x8x128xf32, #tpu.memory_space<vmem>>) attributes {dimension_semantics = [#tpu.dimension_semantics<parallel>], iteration_bounds = array<i64: 4>, scalar_prefetch = 0 : i64, scratch_operands = 0 : i64, tpu.core_type = #tpu.core_type<tc>, window_params = [{transform_indices = @transform_0, window_bounds = array<i64: 1, 8, 16>}, {transform_indices = @transform_1, window_bounds = array<i64: 1, 8, 8>}, {transform_indices = @transform_2, window_bounds = array<i64: 1, 8, 32>}, {pipeline_mode = #tpu.pipeline_mode<synchronous>, transform_indices = @transform_3, window_bounds = array<i64: 16, 32>}, {pipeline_mode = #tpu.pipeline_mode<synchronous>, transform_indices = @transform_4, window_bounds = array<i64: 256, 32>}, {pipeline_mode = #tpu.pipeline_mode<synchronous>, transform_indices = @transform_5, window_bounds = array<i64: 8, 32>}, {transform_indices = @transform_6, window_bounds = array<i64: 1, 8, 128>}]} {
    %c0 = arith.constant 0 : index
    %c0_0 = arith.constant 0 : index
    %c0_1 = arith.constant 0 : index
    %0 = vector.load %arg1[%c0, %c0_0, %c0_1] : memref<1x8x16xf32, #tpu.memory_space<vmem>>, vector<1x8x16xf32>
    %1 = vector.shape_cast %0 : vector<1x8x16xf32> to vector<8x16xf32>
    %c0_2 = arith.constant 0 : index
    %c0_3 = arith.constant 0 : index
    %2 = vector.load %arg4[%c0_2, %c0_3] : memref<16x32xbf16, #tpu.memory_space<vmem>>, vector<16x32xbf16>
    %3 = arith.truncf %1 : vector<8x16xf32> to vector<8x16xbf16>
    %cst = arith.constant dense<0.000000e+00> : vector<8x32xf32>
    %4 = tpu.matmul %3, %2, %cst {dimension_numbers = #tpu.dot_dimension_numbers<[1], [0], [0], [1], [0, 0, 1, 1], [], []>} : vector<8x16xbf16>, vector<16x32xbf16>, vector<8x32xf32> -> vector<8x32xf32>
    %c0_4 = arith.constant 0 : index
    %c0_5 = arith.constant 0 : index
    %5 = vector.load %arg6[%c0_4, %c0_5] : memref<8x32xf32, #tpu.memory_space<vmem>>, vector<1x32xf32>
    %6 = vector.broadcast %5 : vector<1x32xf32> to vector<8x32xf32>
    %7 = arith.addf %4, %6 : vector<8x32xf32>
    %cst_6 = arith.constant 0.000000e+00 : f32
    %8 = vector.broadcast %cst_6 : f32 to vector<8x32xf32>
    %9 = arith.maximumf %7, %8 : vector<8x32xf32>
    %c0_7 = arith.constant 0 : index
    %c0_8 = arith.constant 0 : index
    %10 = vector.load %arg5[%c0_7, %c0_8] : memref<256x32xbf16, #tpu.memory_space<vmem>>, vector<32x32xbf16>
    %11 = arith.truncf %9 : vector<8x32xf32> to vector<8x32xbf16>
    %cst_9 = arith.constant dense<0.000000e+00> : vector<8x32xf32>
    %12 = tpu.matmul %11, %10, %cst_9 {dimension_numbers = #tpu.dot_dimension_numbers<[1], [0], [0], [1], [0, 0, 1, 1], [], []>} : vector<8x32xbf16>, vector<32x32xbf16>, vector<8x32xf32> -> vector<8x32xf32>
    %c1 = arith.constant 1 : index
    %c0_10 = arith.constant 0 : index
    %13 = vector.load %arg6[%c1, %c0_10] : memref<8x32xf32, #tpu.memory_space<vmem>>, vector<1x32xf32>
    %14 = vector.broadcast %13 : vector<1x32xf32> to vector<8x32xf32>
    %15 = arith.addf %12, %14 : vector<8x32xf32>
    %cst_11 = arith.constant 0.000000e+00 : f32
    %16 = vector.broadcast %cst_11 : f32 to vector<8x32xf32>
    %17 = arith.maximumf %15, %16 : vector<8x32xf32>
    %c0_12 = arith.constant 0 : index
    %c0_13 = arith.constant 0 : index
    %c0_14 = arith.constant 0 : index
    %18 = vector.load %arg2[%c0_12, %c0_13, %c0_14] : memref<1x8x8xf32, #tpu.memory_space<vmem>>, vector<1x8x8xf32>
    %19 = vector.shape_cast %18 : vector<1x8x8xf32> to vector<8x8xf32>
    %20 = tpu.iota {dimensions = array<i32: 0>} : vector<8x8xi32>
    %21 = tpu.iota {dimensions = array<i32: 1>} : vector<8x8xi32>
    %22 = arith.cmpi eq, %20, %21 : vector<8x8xi32>
    %cst_15 = arith.constant 0.000000e+00 : f32
    %23 = vector.broadcast %cst_15 : f32 to vector<8x8xf32>
    %24 = arith.cmpf one, %19, %23 : vector<8x8xf32>
    %25 = arith.ori %22, %24 : vector<8x8xi1>
    %cst_16 = arith.constant 1.000000e+00 : f32
    %cst_17 = arith.constant 0.000000e+00 : f32
    %26 = vector.broadcast %cst_16 : f32 to vector<8x8xf32>
    %27 = vector.broadcast %cst_17 : f32 to vector<8x8xf32>
    %28 = arith.select %25, %26, %27 : vector<8x8xi1>, vector<8x8xf32>
    %cst_18 = arith.constant dense<0.000000e+00> : vector<8xf32>
    %29 = vector.multi_reduction <add>, %28, %cst_18 [1] : vector<8x8xf32> to vector<8xf32>
    %30 = vector.shape_cast %29 : vector<8xf32> to vector<8x1xf32>
    %31 = math.rsqrt %30 : vector<8x1xf32>
    %c32 = arith.constant 32 : index
    %c0_19 = arith.constant 0 : index
    %32 = vector.load %arg5[%c32, %c0_19] : memref<256x32xbf16, #tpu.memory_space<vmem>>, vector<32x32xbf16>
    %33 = arith.truncf %17 : vector<8x32xf32> to vector<8x32xbf16>
    %cst_20 = arith.constant dense<0.000000e+00> : vector<8x32xf32>
    %34 = tpu.matmul %33, %32, %cst_20 {dimension_numbers = #tpu.dot_dimension_numbers<[1], [0], [0], [1], [0, 0, 1, 1], [], []>} : vector<8x32xbf16>, vector<32x32xbf16>, vector<8x32xf32> -> vector<8x32xf32>
    %35 = vector.broadcast %31 : vector<8x1xf32> to vector<8x32xf32>
    %36 = arith.mulf %34, %35 : vector<8x32xf32>
    %37 = arith.truncf %28 : vector<8x8xf32> to vector<8x8xbf16>
    %38 = arith.truncf %36 : vector<8x32xf32> to vector<8x32xbf16>
    %cst_21 = arith.constant dense<0.000000e+00> : vector<8x32xf32>
    %39 = tpu.matmul %37, %38, %cst_21 {dimension_numbers = #tpu.dot_dimension_numbers<[1], [0], [0], [1], [0, 0, 1, 1], [], []>} : vector<8x8xbf16>, vector<8x32xbf16>, vector<8x32xf32> -> vector<8x32xf32>
    %40 = vector.broadcast %31 : vector<8x1xf32> to vector<8x32xf32>
    %41 = arith.mulf %39, %40 : vector<8x32xf32>
    %c2 = arith.constant 2 : index
    %c0_22 = arith.constant 0 : index
    %42 = vector.load %arg6[%c2, %c0_22] : memref<8x32xf32, #tpu.memory_space<vmem>>, vector<1x32xf32>
    %43 = vector.broadcast %42 : vector<1x32xf32> to vector<8x32xf32>
    %44 = arith.addf %41, %43 : vector<8x32xf32>
    %cst_23 = arith.constant 0.000000e+00 : f32
    %45 = vector.broadcast %cst_23 : f32 to vector<8x32xf32>
    %46 = arith.maximumf %44, %45 : vector<8x32xf32>
    %c64 = arith.constant 64 : index
    %c0_24 = arith.constant 0 : index
    %47 = vector.load %arg5[%c64, %c0_24] : memref<256x32xbf16, #tpu.memory_space<vmem>>, vector<32x32xbf16>
    %48 = arith.truncf %46 : vector<8x32xf32> to vector<8x32xbf16>
    %cst_25 = arith.constant dense<0.000000e+00> : vector<8x32xf32>
    %49 = tpu.matmul %48, %47, %cst_25 {dimension_numbers = #tpu.dot_dimension_numbers<[1], [0], [0], [1], [0, 0, 1, 1], [], []>} : vector<8x32xbf16>, vector<32x32xbf16>, vector<8x32xf32> -> vector<8x32xf32>
    %c3 = arith.constant 3 : index
    %c0_26 = arith.constant 0 : index
    %50 = vector.load %arg6[%c3, %c0_26] : memref<8x32xf32, #tpu.memory_space<vmem>>, vector<1x32xf32>
    %51 = vector.broadcast %50 : vector<1x32xf32> to vector<8x32xf32>
    %52 = arith.addf %49, %51 : vector<8x32xf32>
    %cst_27 = arith.constant 0.000000e+00 : f32
    %53 = vector.broadcast %cst_27 : f32 to vector<8x32xf32>
    %54 = arith.maximumf %52, %53 : vector<8x32xf32>
    %55 = tpu.concatenate %54, %17 in 1 : vector<8x32xf32>, vector<8x32xf32> -> vector<8x64xf32>
    %c96 = arith.constant 96 : index
    %c0_28 = arith.constant 0 : index
    %56 = vector.load %arg5[%c96, %c0_28] : memref<256x32xbf16, #tpu.memory_space<vmem>>, vector<64x32xbf16>
    %57 = arith.truncf %55 : vector<8x64xf32> to vector<8x64xbf16>
    %cst_29 = arith.constant dense<0.000000e+00> : vector<8x32xf32>
    %58 = tpu.matmul %57, %56, %cst_29 {dimension_numbers = #tpu.dot_dimension_numbers<[1], [0], [0], [1], [0, 0, 1, 1], [], []>} : vector<8x64xbf16>, vector<64x32xbf16>, vector<8x32xf32> -> vector<8x32xf32>
    %c4 = arith.constant 4 : index
    %c0_30 = arith.constant 0 : index
    %59 = vector.load %arg6[%c4, %c0_30] : memref<8x32xf32, #tpu.memory_space<vmem>>, vector<1x32xf32>
    %60 = vector.broadcast %59 : vector<1x32xf32> to vector<8x32xf32>
    %61 = arith.addf %58, %60 : vector<8x32xf32>
    %cst_31 = arith.constant 0.000000e+00 : f32
    %62 = vector.broadcast %cst_31 : f32 to vector<8x32xf32>
    %63 = arith.maximumf %61, %62 : vector<8x32xf32>
    %c160 = arith.constant 160 : index
    %c0_32 = arith.constant 0 : index
    %64 = vector.load %arg5[%c160, %c0_32] : memref<256x32xbf16, #tpu.memory_space<vmem>>, vector<32x32xbf16>
    %65 = arith.truncf %63 : vector<8x32xf32> to vector<8x32xbf16>
    %cst_33 = arith.constant dense<0.000000e+00> : vector<8x32xf32>
    %66 = tpu.matmul %65, %64, %cst_33 {dimension_numbers = #tpu.dot_dimension_numbers<[1], [0], [0], [1], [0, 0, 1, 1], [], []>} : vector<8x32xbf16>, vector<32x32xbf16>, vector<8x32xf32> -> vector<8x32xf32>
    %c5 = arith.constant 5 : index
    %c0_34 = arith.constant 0 : index
    %67 = vector.load %arg6[%c5, %c0_34] : memref<8x32xf32, #tpu.memory_space<vmem>>, vector<1x32xf32>
    %68 = vector.broadcast %67 : vector<1x32xf32> to vector<8x32xf32>
    %69 = arith.addf %66, %68 : vector<8x32xf32>
    %cst_35 = arith.constant 0.000000e+00 : f32
    %70 = vector.broadcast %cst_35 : f32 to vector<8x32xf32>
    %71 = arith.maximumf %69, %70 : vector<8x32xf32>
    %c192 = arith.constant 192 : index
    %c0_36 = arith.constant 0 : index
    %72 = vector.load %arg5[%c192, %c0_36] : memref<256x32xbf16, #tpu.memory_space<vmem>>, vector<32x32xbf16>
    %73 = arith.truncf %71 : vector<8x32xf32> to vector<8x32xbf16>
    %cst_37 = arith.constant dense<0.000000e+00> : vector<8x32xf32>
    %74 = tpu.matmul %73, %72, %cst_37 {dimension_numbers = #tpu.dot_dimension_numbers<[1], [0], [0], [1], [0, 0, 1, 1], [], []>} : vector<8x32xbf16>, vector<32x32xbf16>, vector<8x32xf32> -> vector<8x32xf32>
    %c6 = arith.constant 6 : index
    %c0_38 = arith.constant 0 : index
    %75 = vector.load %arg6[%c6, %c0_38] : memref<8x32xf32, #tpu.memory_space<vmem>>, vector<1x32xf32>
    %76 = vector.broadcast %75 : vector<1x32xf32> to vector<8x32xf32>
    %77 = arith.addf %74, %76 : vector<8x32xf32>
    %c224 = arith.constant 224 : index
    %c0_39 = arith.constant 0 : index
    %78 = vector.load %arg5[%c224, %c0_39] : memref<256x32xbf16, #tpu.memory_space<vmem>>, vector<32x32xbf16>
    %79 = arith.truncf %71 : vector<8x32xf32> to vector<8x32xbf16>
    %cst_40 = arith.constant dense<0.000000e+00> : vector<8x32xf32>
    %80 = tpu.matmul %79, %78, %cst_40 {dimension_numbers = #tpu.dot_dimension_numbers<[1], [0], [0], [1], [0, 0, 1, 1], [], []>} : vector<8x32xbf16>, vector<32x32xbf16>, vector<8x32xf32> -> vector<8x32xf32>
    %c7 = arith.constant 7 : index
    %c0_41 = arith.constant 0 : index
    %81 = vector.load %arg6[%c7, %c0_41] : memref<8x32xf32, #tpu.memory_space<vmem>>, vector<1x32xf32>
    %82 = vector.broadcast %81 : vector<1x32xf32> to vector<8x32xf32>
    %83 = arith.addf %80, %82 : vector<8x32xf32>
    %84 = math.exp %83 : vector<8x32xf32>
    %c0_42 = arith.constant 0 : index
    %c0_43 = arith.constant 0 : index
    %c0_44 = arith.constant 0 : index
    %85 = vector.load %arg3[%c0_42, %c0_43, %c0_44] : memref<1x8x32xf32, #tpu.memory_space<vmem>>, vector<1x8x32xf32>
    %86 = vector.shape_cast %85 : vector<1x8x32xf32> to vector<8x32xf32>
    %87 = arith.mulf %84, %86 : vector<8x32xf32>
    %88 = arith.addf %77, %87 : vector<8x32xf32>
    %cst_45 = arith.constant -5.000000e-01 : f32
    %89 = vector.broadcast %cst_45 : f32 to vector<8x32xf32>
    %90 = arith.mulf %89, %86 : vector<8x32xf32>
    %91 = arith.mulf %90, %86 : vector<8x32xf32>
    %92 = arith.subf %91, %83 : vector<8x32xf32>
    %cst_46 = arith.constant 0.918938517 : f32
    %93 = vector.broadcast %cst_46 : f32 to vector<8x32xf32>
    %94 = arith.subf %92, %93 : vector<8x32xf32>
    %cst_47 = arith.constant -1.000000e+00 : f32
    %cst_48 = arith.constant 1.000000e+00 : f32
    %95 = vector.broadcast %cst_47 : f32 to vector<8x32xf32>
    %96 = arith.maximumf %95, %88 : vector<8x32xf32>
    %97 = vector.broadcast %cst_48 : f32 to vector<8x32xf32>
    %98 = arith.minimumf %97, %96 : vector<8x32xf32>
    %99 = tpu.concatenate %98, %94, %77, %84 in 1 : vector<8x32xf32>, vector<8x32xf32>, vector<8x32xf32>, vector<8x32xf32> -> vector<8x128xf32>
    %c0_49 = arith.constant 0 : index
    %c0_50 = arith.constant 0 : index
    %c0_51 = arith.constant 0 : index
    %100 = vector.load %arg7[%c0_49, %c0_50, %c0_51] : memref<1x8x128xf32, #tpu.memory_space<vmem>>, vector<1x8x128xf32>
    %101 = vector.shape_cast %100 : vector<1x8x128xf32> to vector<8x128xf32>
    %102 = vector.shape_cast %99 : vector<8x128xf32> to vector<1x8x128xf32>
    tpu.vector_store %arg7[%c0_49, %c0_50, %c0_51], %102 {strides = array<i32>} : memref<1x8x128xf32, #tpu.memory_space<vmem>>, vector<1x8x128xf32>,
    return
  }
  func.func @transform_0(%arg0: i32) -> (i32, i32, i32) {
    %c0_i32 = arith.constant 0 : i32
    %c0_i32_0 = arith.constant 0 : i32
    %c0_i32_1 = arith.constant 0 : i32
    return %arg0, %c0_i32, %c0_i32_0 : i32, i32, i32
  }
  func.func @transform_1(%arg0: i32) -> (i32, i32, i32) {
    %c0_i32 = arith.constant 0 : i32
    %c0_i32_0 = arith.constant 0 : i32
    %c0_i32_1 = arith.constant 0 : i32
    return %arg0, %c0_i32, %c0_i32_0 : i32, i32, i32
  }
  func.func @transform_2(%arg0: i32) -> (i32, i32, i32) {
    %c0_i32 = arith.constant 0 : i32
    %c0_i32_0 = arith.constant 0 : i32
    %c0_i32_1 = arith.constant 0 : i32
    return %arg0, %c0_i32, %c0_i32_0 : i32, i32, i32
  }
  func.func @transform_3(%arg0: i32) -> (i32, i32) {
    %c0_i32 = arith.constant 0 : i32
    %c0_i32_0 = arith.constant 0 : i32
    %c0_i32_1 = arith.constant 0 : i32
    return %c0_i32, %c0_i32_0 : i32, i32
  }
  func.func @transform_4(%arg0: i32) -> (i32, i32) {
    %c0_i32 = arith.constant 0 : i32
    %c0_i32_0 = arith.constant 0 : i32
    %c0_i32_1 = arith.constant 0 : i32
    return %c0_i32, %c0_i32_0 : i32, i32
  }
  func.func @transform_5(%arg0: i32) -> (i32, i32) {
    %c0_i32 = arith.constant 0 : i32
    %c0_i32_0 = arith.constant 0 : i32
    %c0_i32_1 = arith.constant 0 : i32
    return %c0_i32, %c0_i32_0 : i32, i32
  }
  func.func @transform_6(%arg0: i32) -> (i32, i32, i32) {
    %c0_i32 = arith.constant 0 : i32
    %c0_i32_0 = arith.constant 0 : i32
    %c0_i32_1 = arith.constant 0 : i32
    return %arg0, %c0_i32, %c0_i32_0 : i32, i32, i32
  }
}

</mosaic_0001>

<llo_original>
// kernel: graph_actor_forward.1
$region0: #{graph_actor_forward.1}
  #allocation0 [shape = 'u32[]', space=smem, size = 0x4, offset = 0x4, fixed_abs, tag = 'smem constant byte address 0x4 - core index']
  #allocation1 [shape = 'u32[144,128]{1,0:T(1,128)}', space=vmem, size = 0x12000, scoped, tag = 'internal scratch']
  %s0 = inlined_call_operand.vmem [shape: f32[4,8,16], index: 0, kind: input, shape index: {}]
  %s1 = inlined_call_operand.vmem [shape: f32[4,8,8], index: 1, kind: input, shape index: {}]
  %s2 = inlined_call_operand.vmem [shape: f32[4,8,32], index: 2, kind: input, shape index: {}]
  %s3 = inlined_call_operand.vmem [shape: bf16[16,32], index: 3, kind: input, shape index: {}]
  %s4 = inlined_call_operand.vmem [shape: bf16[256,32], index: 4, kind: input, shape index: {}]
  %s5 = inlined_call_operand.vmem [shape: f32[8,32], index: 5, kind: input, shape index: {}]
  %s6 = inlined_call_operand.vmem [shape: f32[4,8,128], index: 6, kind: output, shape index: {}]
  %s7 = sld [smem:[#allocation0]]
  $region57: #{graph_actor_forward.1} parent=0
    _
  %s9 = ssub.s32 1, %s7
  %s10 = scalar_select 0, %s9, %s7
  loop: start=0, step=1, limit=6
  $region2: #{graph_actor_forward.1} parent=0 // loop_pre_header
    _
  $region3: #{graph_actor_forward.1} parent=0 // loop_header
    %s12 = sphi 0, %s16
    %p13 = scmp.ge.s32.totalorder %s12, 6
    %s22 = sphi 0, %s24
    %s25 = sphi 0, %s22
    %s26 = sphi 0, %s25
    %s42 = sphi 0, %s26
    %s48 = sphi 0, %s50
    %s51 = sphi 0, %s48
    %s52 = sphi 0, %s51
    %s68 = sphi 0, %s52
    %s74 = sphi 0, %s76
    %s77 = sphi 0, %s74
    %s78 = sphi 0, %s77
    %s94 = sphi 0, %s78
    %s98 = sphi 0, %s98
    %s100 = sphi 0, %s98
    %s101 = sphi 0, %s100
    %s115 = sphi 0, %s101
    %s119 = sphi 0, %s119
    %s121 = sphi 0, %s119
    %s122 = sphi 0, %s121
    %s136 = sphi 0, %s122
    %s140 = sphi 0, %s140
    %s142 = sphi 0, %s140
    %s143 = sphi 0, %s142
    %s157 = sphi 0, %s143
    %s163 = sphi 0, %s165
    %s166 = sphi 0, %s163
    %s167 = sphi 0, %s166
    %s183 = sphi 0, %s167
  $region4: #{graph_actor_forward.1} parent=0 // loop_header_branch
    %15 = sbr.rel (%p13) target = $region8
  $region5: #{graph_actor_forward.1} parent=0 // loop_body
    %s17 = ssub.s32 %s12, 1
    %s18 = ssub.s32 %s12, 2
    %s19 = sadd.s32 %s12, 1
    %s20 = ssub.s32 %s12, %s19
    %p21 = scmp.eq.s32.totalorder %s20, 0
    %s23 = sadd.s32 %s22, 1
    %s24 = scalar_select %p21, %s22, %s23
    %p27 = pneg %p21
    %p28 = scmp.eq.s32.totalorder %s12, 3
    %p29 = por %p27, %p28
    %p30 = scmp.ne.s32.totalorder %s22, %s25
    %p31 = scmp.eq.s32.totalorder %s12, 0
    %p32 = por %p30, %p31
    %p33 = scmp.ne.s32.totalorder %s22, %s25
    %p34 = scmp.eq.s32.totalorder %s17, 3
    %p35 = por %p33, %p34
    %p36 = scmp.ne.s32.totalorder %s25, %s26
    %p37 = scmp.eq.s32.totalorder %s17, 0
    %p38 = por %p36, %p37
    %p39 = scmp.ne.s32.totalorder %s25, %s26
    %p40 = scmp.eq.s32.totalorder %s18, 3
    %p41 = por %p39, %p40
    %p43 = scmp.ne.s32.totalorder %s26, %s42
    %p44 = scmp.eq.s32.totalorder %s18, 0
    %p45 = por %p43, %p44
    %s46 = ssub.s32 %s12, %s19
    %p47 = scmp.eq.s32.totalorder %s46, 0
    %s49 = sadd.s32 %s48, 1
    %s50 = scalar_select %p47, %s48, %s49
    %p53 = pneg %p47
    %p54 = scmp.eq.s32.totalorder %s12, 3
    %p55 = por %p53, %p54
    %p56 = scmp.ne.s32.totalorder %s48, %s51
    %p57 = scmp.eq.s32.totalorder %s12, 0
    %p58 = por %p56, %p57
    %p59 = scmp.ne.s32.totalorder %s48, %s51
    %p60 = scmp.eq.s32.totalorder %s17, 3
    %p61 = por %p59, %p60
    %p62 = scmp.ne.s32.totalorder %s51, %s52
    %p63 = scmp.eq.s32.totalorder %s17, 0
    %p64 = por %p62, %p63
    %p65 = scmp.ne.s32.totalorder %s51, %s52
    %p66 = scmp.eq.s32.totalorder %s18, 3
    %p67 = por %p65, %p66
    %p69 = scmp.ne.s32.totalorder %s52, %s68
    %p70 = scmp.eq.s32.totalorder %s18, 0
    %p71 = por %p69, %p70
    %s72 = ssub.s32 %s12, %s19
    %p73 = scmp.eq.s32.totalorder %s72, 0
    %s75 = sadd.s32 %s74, 1
    %s76 = scalar_select %p73, %s74, %s75
    %p79 = pneg %p73
    %p80 = scmp.eq.s32.totalorder %s12, 3
    %p81 = por %p79, %p80
    %p82 = scmp.ne.s32.totalorder %s74, %s77
    %p83 = scmp.eq.s32.totalorder %s12, 0
    %p84 = por %p82, %p83
    %p85 = scmp.ne.s32.totalorder %s74, %s77
    %p86 = scmp.eq.s32.totalorder %s17, 3
    %p87 = por %p85, %p86
    %p88 = scmp.ne.s32.totalorder %s77, %s78
    %p89 = scmp.eq.s32.totalorder %s17, 0
    %p90 = por %p88, %p89
    %p91 = scmp.ne.s32.totalorder %s77, %s78
    %p92 = scmp.eq.s32.totalorder %s18, 3
    %p93 = por %p91, %p92
    %p95 = scmp.ne.s32.totalorder %s78, %s94
    %p96 = scmp.eq.s32.totalorder %s18, 0
    %p97 = por %p95, %p96
    %s99 = sadd.s32 %s98, 1
    %p102 = scmp.eq.s32.totalorder %s12, 3
    %p103 = scmp.ne.s32.totalorder %s98, %s100
    %p104 = scmp.eq.s32.totalorder %s12, 0
    %p105 = por %p103, %p104
    %p106 = scmp.ne.s32.totalorder %s98, %s100
    %p107 = scmp.eq.s32.totalorder %s17, 3
    %p108 = por %p106, %p107
    %p109 = scmp.ne.s32.totalorder %s100, %s101
    %p110 = scmp.eq.s32.totalorder %s17, 0
    %p111 = por %p109, %p110
    %p112 = scmp.ne.s32.totalorder %s100, %s101
    %p113 = scmp.eq.s32.totalorder %s18, 3
    %p114 = por %p112, %p113
    %p116 = scmp.ne.s32.totalorder %s101, %s115
    %p117 = scmp.eq.s32.totalorder %s18, 0
    %p118 = por %p116, %p117
    %s120 = sadd.s32 %s119, 1
    %p123 = scmp.eq.s32.totalorder %s12, 3
    %p124 = scmp.ne.s32.totalorder %s119, %s121
    %p125 = scmp.eq.s32.totalorder %s12, 0
    %p126 = por %p124, %p125
    %p127 = scmp.ne.s32.totalorder %s119, %s121
    %p128 = scmp.eq.s32.totalorder %s17, 3
    %p129 = por %p127, %p128
    %p130 = scmp.ne.s32.totalorder %s121, %s122
    %p131 = scmp.eq.s32.totalorder %s17, 0
    %p132 = por %p130, %p131
    %p133 = scmp.ne.s32.totalorder %s121, %s122
    %p134 = scmp.eq.s32.totalorder %s18, 3
    %p135 = por %p133, %p134
    %p137 = scmp.ne.s32.totalorder %s122, %s136
    %p138 = scmp.eq.s32.totalorder %s18, 0
    %p139 = por %p137, %p138
    %s141 = sadd.s32 %s140, 1
    %p144 = scmp.eq.s32.totalorder %s12, 3
    %p145 = scmp.ne.s32.totalorder %s140, %s142
    %p146 = scmp.eq.s32.totalorder %s12, 0
    %p147 = por %p145, %p146
    %p148 = scmp.ne.s32.totalorder %s140, %s142
    %p149 = scmp.eq.s32.totalorder %s17, 3
    %p150 = por %p148, %p149
    %p151 = scmp.ne.s32.totalorder %s142, %s143
    %p152 = scmp.eq.s32.totalorder %s17, 0
    %p153 = por %p151, %p152
    %p154 = scmp.ne.s32.totalorder %s142, %s143
    %p155 = scmp.eq.s32.totalorder %s18, 3
    %p156 = por %p154, %p155
    %p158 = scmp.ne.s32.totalorder %s143, %s157
    %p159 = scmp.eq.s32.totalorder %s18, 0
    %p160 = por %p158, %p159
    %s161 = ssub.s32 %s12, %s19
    %p162 = scmp.eq.s32.totalorder %s161, 0
    %s164 = sadd.s32 %s163, 1
    %s165 = scalar_select %p162, %s163, %s164
    %p168 = pneg %p162
    %p169 = scmp.eq.s32.totalorder %s12, 3
    %p170 = por %p168, %p169
    %p171 = scmp.ne.s32.totalorder %s163, %s166
    %p172 = scmp.eq.s32.totalorder %s12, 0
    %p173 = por %p171, %p172
    %p174 = scmp.ne.s32.totalorder %s163, %s166
    %p175 = scmp.eq.s32.totalorder %s17, 3
    %p176 = por %p174, %p175
    %p177 = scmp.ne.s32.totalorder %s166, %s167
    %p178 = scmp.eq.s32.totalorder %s17, 0
    %p179 = por %p177, %p178
    %p180 = scmp.ne.s32.totalorder %s166, %s167
    %p181 = scmp.eq.s32.totalorder %s18, 3
    %p182 = por %p180, %p181
    %p184 = scmp.ne.s32.totalorder %s167, %s183
    %p185 = scmp.eq.s32.totalorder %s18, 0
    %p186 = por %p184, %p185
    %p187 = scmp.le.s32.totalorder 1, %s12
    %p188 = scmp.lt.s32.totalorder %s12, 5
    %p189 = pnand %p187, %p188
    %p190 = pneg %p189
    // Predicated region
    $region9: #{graph_actor_forward.1} parent=5 // pred_check
      _
    $region10: #{graph_actor_forward.1} parent=5 // pred_check_branch
      %192 = sbr.rel (%p189) target = $region12
    $region11: #{graph_actor_forward.1} parent=5 // pred_region
      %s193 = ssub.s32 %s12, 1
      // Predicated region
      $region13: #{graph_actor_forward.1} parent=11 // pred_check
        %p194 = pneg %p111
      $region14: #{graph_actor_forward.1} parent=11 // pred_check_branch
        %196 = sbr.rel (%p194) target = $region16
      $region15: #{graph_actor_forward.1} parent=11 // pred_region
        _
      $region16: #{graph_actor_forward.1} parent=11 // pred_fallthru
        _
      // Predicated region
      $region17: #{graph_actor_forward.1} parent=11 // pred_check
        %p197 = pneg %p132
      $region18: #{graph_actor_forward.1} parent=11 // pred_check_branch
        %199 = sbr.rel (%p197) target = $region20
      $region19: #{graph_actor_forward.1} parent=11 // pred_region
        _
      $region20: #{graph_actor_forward.1} parent=11 // pred_fallthru
        _
      // Predicated region
      $region21: #{graph_actor_forward.1} parent=11 // pred_check
        %p200 = pneg %p153
      $region22: #{graph_actor_forward.1} parent=11 // pred_check_branch
        %202 = sbr.rel (%p200) target = $region24
      $region23: #{graph_actor_forward.1} parent=11 // pred_region
        _
      $region24: #{graph_actor_forward.1} parent=11 // pred_fallthru
        _
    $region12: #{graph_actor_forward.1} parent=5 // pred_fallthru
      _
    %p203 = scmp.lt.s32.totalorder %s12, 4
    // Predicated region
    $region25: #{graph_actor_forward.1} parent=5 // pred_check
      %p204 = pneg %p203
    $region26: #{graph_actor_forward.1} parent=5 // pred_check_branch
      %206 = sbr.rel (%p204) target = $region28
    $region27: #{graph_actor_forward.1} parent=5 // pred_region
      // Predicated region
      $region29: #{graph_actor_forward.1} parent=27 // pred_check
        %p207 = pneg %p32
      $region30: #{graph_actor_forward.1} parent=27 // pred_check_branch
        %209 = sbr.rel (%p207) target = $region32
      $region31: #{graph_actor_forward.1} parent=27 // pred_region
        %p210 = scmp.lt.s32.totalorder %s12, 3
        %s211 = scalar_select %p210, %s12, 3
        %s212 = smul.addr %s211, 8
        %s213 = scalar_lea.vmem %s0, %s212
      $region32: #{graph_actor_forward.1} parent=27 // pred_fallthru
        _
      // Predicated region
      $region33: #{graph_actor_forward.1} parent=27 // pred_check
        %p214 = pneg %p58
      $region34: #{graph_actor_forward.1} parent=27 // pred_check_branch
        %216 = sbr.rel (%p214) target = $region36
      $region35: #{graph_actor_forward.1} parent=27 // pred_region
        %p217 = scmp.lt.s32.totalorder %s12, 3
        %s218 = scalar_select %p217, %s12, 3
        %s219 = smul.addr %s218, 8
        %s220 = scalar_lea.vmem %s1, %s219
      $region36: #{graph_actor_forward.1} parent=27 // pred_fallthru
        _
      // Predicated region
      $region37: #{graph_actor_forward.1} parent=27 // pred_check
        %p221 = pneg %p84
      $region38: #{graph_actor_forward.1} parent=27 // pred_check_branch
        %223 = sbr.rel (%p221) target = $region40
      $region39: #{graph_actor_forward.1} parent=27 // pred_region
        %p224 = scmp.lt.s32.totalorder %s12, 3
        %s225 = scalar_select %p224, %s12, 3
        %s226 = smul.addr %s225, 8
        %s227 = scalar_lea.vmem %s2, %s226
      $region40: #{graph_actor_forward.1} parent=27 // pred_fallthru
        _
    $region28: #{graph_actor_forward.1} parent=5 // pred_fallthru
      _
    %p228 = scmp.le.s32.totalorder 1, %s12
    %p229 = scmp.lt.s32.totalorder %s12, 5
    %p230 = pnand %p228, %p229
    %p231 = pneg %p230
    // Predicated region
    $region41: #{graph_actor_forward.1} parent=5 // pred_check
      _
    $region42: #{graph_actor_forward.1} parent=5 // pred_check_branch
      %233 = sbr.rel (%p230) target = $region44
    $region43: #{graph_actor_forward.1} parent=5 // pred_region
      %s234 = ssub.s32 %s12, 1
      %p235 = scmp.lt.s32.totalorder %s17, 3
      %s236 = scalar_select %p235, %s17, 3
      %s237 = smul.addr %s236, 8
      %s238 = scalar_lea.vmem %s0, %s237
      %p239 = pneg %p38
      %p240 = pneg %p35
      %p241 = scmp.lt.s32.totalorder %s17, 3
      %s242 = scalar_select %p241, %s17, 3
      %s243 = smul.addr %s242, 8
      %s244 = scalar_lea.vmem %s1, %s243
      %p245 = pneg %p64
      %p246 = pneg %p61
      %p247 = scmp.lt.s32.totalorder %s17, 3
      %s248 = scalar_select %p247, %s17, 3
      %s249 = smul.addr %s248, 8
      %s250 = scalar_lea.vmem %s2, %s249
      %p251 = pneg %p90
      %p252 = pneg %p87
      %p253 = pneg %p111
      %p254 = pneg %p108
      %p255 = pneg %p132
      %p256 = pneg %p129
      %p257 = pneg %p153
      %p258 = pneg %p150
      %p259 = pneg %p179
      %p260 = pneg %p176
      %p261 = scmp.lt.s32.totalorder %s17, 3
      %s262 = scalar_select %p261, %s17, 3
      %s263 = smul.addr %s262, 8
      %s264 = scalar_lea.vmem %s6, %s263
      %p265 = scmp.lt.s32.totalorder %s17, 3
      %s266 = scalar_select %p265, %s17, 3
      %s267 = smul.addr %s266, 8
      %s268 = scalar_lea.vmem %s0, %s267
      %p269 = scmp.lt.s32.totalorder %s17, 3
      %s270 = scalar_select %p269, %s17, 3
      %s271 = smul.addr %s270, 8
      %s272 = scalar_lea.vmem %s1, %s271
      %p273 = scmp.lt.s32.totalorder %s17, 3
      %s274 = scalar_select %p273, %s17, 3
      %s275 = smul.addr %s274, 8
      %s276 = scalar_lea.vmem %s2, %s275
      %p277 = scmp.lt.s32.totalorder %s17, 3
      %s278 = scalar_select %p277, %s17, 3
      %s279 = smul.addr %s278, 8
      %s280 = scalar_lea.vmem %s6, %s279
      %v282 = vld [vmem:[%s268] sm:$0xff]
      %v283 = vld [vmem:[%s3] sm:$0xf]
      %v284 = vld [vmem:[%s3 + $0x4] sm:$0xf]
      %v285 = vpack.c.bf16 %v282, %v282
      %v286 = vld [vmem:[%s5] sm:$0x1]
      %v287 = vlaneseq
      %v288 = vshrl.u32 %v287, 7
      %v289 = vsub.s32 0, %v288
      %v290 = vrot.slane %v286, %v289
      %v293 = vunpack.c.l.b16 %v283
      %v294 = vunpack.c.l.b16 %v284
      %v295 = vpack.c.b16 %v294, %v293
      %vm297 = vcmask 130048
      %v299 = vsel %vm297, %v285, 0
      %301 = vmatprep.subr.bf16.mxu0 0
      %302 = vmatpush1.bf16.msra.mxu0 %v295
      %303 = vmatprep.subr.bf16.mxu0 0
      %304 = vmatpush1.bf16.msra.mxu0 0
      %305 = vmatprep.subr.bf16.mxu0 0
      %306 = vmatpush1.bf16.msra.mxu0 0
      %307 = vmatprep.subr.bf16.mxu0 0
      %308 = vmatpush1.bf16.msra.mxu0 0
      %309 = vmatprep.subr.bf16.mxu0 0
      %310 = vmatpush1.bf16.msra.mxu0 0
      %311 = vmatprep.subr.bf16.mxu0 0
      %312 = vmatpush1.bf16.msra.mxu0 0
      %313 = vmatprep.subr.bf16.mxu0 0
      %314 = vmatpush1.bf16.msra.mxu0 0
      %315 = vmatprep.subr.bf16.mxu0 0
      %316 = vmatpush1.bf16.msra.mxu0 0
      %317 = vmatprep.subr.bf16.mxu0 0
      %318 = vmatpush1.bf16.msra.mxu0 0
      %319 = vmatprep.subr.bf16.mxu0 0
      %320 = vmatpush1.bf16.msra.mxu0 0
      %321 = vmatprep.subr.bf16.mxu0 0
      %322 = vmatpush1.bf16.msra.mxu0 0
      %323 = vmatprep.subr.bf16.mxu0 0
      %324 = vmatpush1.bf16.msra.mxu0 0
      %325 = vmatprep.subr.bf16.mxu0 0
      %326 = vmatpush1.bf16.msra.mxu0 0
      %327 = vmatprep.subr.bf16.mxu0 0
      %328 = vmatpush1.bf16.msra.mxu0 0
      %329 = vmatprep.subr.bf16.mxu0 0
      %330 = vmatpush1.bf16.msra.mxu0 0
      %331 = vmatprep.subr.bf16.mxu0 0
      %332 = vmatpush1.bf16.msra.mxu0 0
      %333 = vmatprep.mubr.bf16.mxu0 0
      %334 = vmatmul.mubr.bf16.gmra.mrb[0].mxu0 %v299
      %v335 = vpop.f32.mrb[0].mxu0
      %v336 = vadd.f32 %v290, %v335
      %v337 = vpop.f32.mrb[0].mxu0
      %v338 = vpop.f32.mrb[0].mxu0
      %v339 = vpop.f32.mrb[0].mxu0
      %340 = vdwg.mxu0
      %v341 = vmax.f32 %v336, 0.0
      %v342 = vld [vmem:[%s4] sm:$0xf]
      %v343 = vld [vmem:[%s4 + $0x4] sm:$0xf]
      %v344 = vld [vmem:[%s4 + $0x8] sm:$0xf]
      %v345 = vld [vmem:[%s4 + $0xc] sm:$0xf]
      %v346 = vpack.c.bf16 %v341, %v341
      %v347 = vld [vmem:[%s5 + $0x1] sm:$0x1]
      %v348 = vlaneseq
      %v349 = vshrl.u32 %v348, 7
      %v350 = vsub.s32 0, %v349
      %v351 = vrot.slane %v347, %v350
      %v356 = vunpack.c.l.b16 %v342
      %v357 = vunpack.c.l.b16 %v343
      %v358 = vunpack.c.l.b16 %v344
      %v359 = vunpack.c.l.b16 %v345
      %v360 = vpack.c.b16 %v357, %v356
      %v361 = vpack.c.b16 %v359, %v358
      %vm364 = vcmask 261120
      %v366 = vsel %vm364, %v346, 0
      %368 = vmatprep.subr.bf16.mxu0 0
      %369 = vmatpush1.bf16.msra.mxu0 %v360
      %370 = vmatprep.subr.bf16.mxu0 0
      %371 = vmatpush1.bf16.msra.mxu0 %v361
      %372 = vmatprep.subr.bf16.mxu0 0
      %373 = vmatpush1.bf16.msra.mxu0 0
      %374 = vmatprep.subr.bf16.mxu0 0
      %375 = vmatpush1.bf16.msra.mxu0 0
      %376 = vmatprep.subr.bf16.mxu0 0
      %377 = vmatpush1.bf16.msra.mxu0 0
      %378 = vmatprep.subr.bf16.mxu0 0
      %379 = vmatpush1.bf16.msra.mxu0 0
      %380 = vmatprep.subr.bf16.mxu0 0
      %381 = vmatpush1.bf16.msra.mxu0 0
      %382 = vmatprep.subr.bf16.mxu0 0
      %383 = vmatpush1.bf16.msra.mxu0 0
      %384 = vmatprep.subr.bf16.mxu0 0
      %385 = vmatpush1.bf16.msra.mxu0 0
      %386 = vmatprep.subr.bf16.mxu0 0
      %387 = vmatpush1.bf16.msra.mxu0 0
      %388 = vmatprep.subr.bf16.mxu0 0
      %389 = vmatpush1.bf16.msra.mxu0 0
      %390 = vmatprep.subr.bf16.mxu0 0
      %391 = vmatpush1.bf16.msra.mxu0 0
      %392 = vmatprep.subr.bf16.mxu0 0
      %393 = vmatpush1.bf16.msra.mxu0 0
      %394 = vmatprep.subr.bf16.mxu0 0
      %395 = vmatpush1.bf16.msra.mxu0 0
      %396 = vmatprep.subr.bf16.mxu0 0
      %397 = vmatpush1.bf16.msra.mxu0 0
      %398 = vmatprep.subr.bf16.mxu0 0
      %399 = vmatpush1.bf16.msra.mxu0 0
      %400 = vmatprep.mubr.bf16.mxu0 0
      %401 = vmatmul.mubr.bf16.gmra.mrb[0].mxu0 %v366
      %v402 = vpop.f32.mrb[0].mxu0
      %v403 = vadd.f32 %v351, %v402
      %v404 = vpop.f32.mrb[0].mxu0
      %v405 = vpop.f32.mrb[0].mxu0
      %v406 = vpop.f32.mrb[0].mxu0
      %407 = vdwg.mxu0
      %v408 = vmax.f32 %v403, 0.0
      %v409 = vld [vmem:[%s272] sm:$0xff]
      %v410 = vlaneseq
      %v411 = vshrl.u32 %v410, 7
      %v412 = vlaneseq
      %v413 = vand.u32 %v412, 127
      %vm414 = vcmp.eq.s32.totalorder %v411, %v413
      %vm415 = vcmp.ne.f32.partialorder %v409, 0.0
      %vm416 = vmor %vm414, %vm415
      %v417 = vsel %vm416, 1.0, 0.0
      %vm418 = vcmask 64512
      %v419 = vsel %vm418, %v417, 0.0
      %420 = vadd.xlane.f32.xlu0 %v419
      %v421 = vpop.xlane.xlu0 %420
      %v422 = vrsqrt.pop %v421
      %v423 = vld [vmem:[%s4 + $0x10] sm:$0xf]
      %v424 = vld [vmem:[%s4 + $0x14] sm:$0xf]
      %v425 = vld [vmem:[%s4 + $0x18] sm:$0xf]
      %v426 = vld [vmem:[%s4 + $0x1c] sm:$0xf]
      %v427 = vpack.c.bf16 %v408, %v408
      %v432 = vunpack.c.l.b16 %v423
      %v433 = vunpack.c.l.b16 %v424
      %v434 = vunpack.c.l.b16 %v425
      %v435 = vunpack.c.l.b16 %v426
      %v436 = vpack.c.b16 %v433, %v432
      %v437 = vpack.c.b16 %v435, %v434
      %v441 = vsel %vm364, %v427, 0
      %443 = vmatprep.subr.bf16.mxu0 0
      %444 = vmatpush1.bf16.msra.mxu0 %v436
      %445 = vmatprep.subr.bf16.mxu0 0
      %446 = vmatpush1.bf16.msra.mxu0 %v437
      %447 = vmatprep.subr.bf16.mxu0 0
      %448 = vmatpush1.bf16.msra.mxu0 0
      %449 = vmatprep.subr.bf16.mxu0 0
      %450 = vmatpush1.bf16.msra.mxu0 0
      %451 = vmatprep.subr.bf16.mxu0 0
      %452 = vmatpush1.bf16.msra.mxu0 0
      %453 = vmatprep.subr.bf16.mxu0 0
      %454 = vmatpush1.bf16.msra.mxu0 0
      %455 = vmatprep.subr.bf16.mxu0 0
      %456 = vmatpush1.bf16.msra.mxu0 0
      %457 = vmatprep.subr.bf16.mxu0 0
      %458 = vmatpush1.bf16.msra.mxu0 0
      %459 = vmatprep.subr.bf16.mxu0 0
      %460 = vmatpush1.bf16.msra.mxu0 0
      %461 = vmatprep.subr.bf16.mxu0 0
      %462 = vmatpush1.bf16.msra.mxu0 0
      %463 = vmatprep.subr.bf16.mxu0 0
      %464 = vmatpush1.bf16.msra.mxu0 0
      %465 = vmatprep.subr.bf16.mxu0 0
      %466 = vmatpush1.bf16.msra.mxu0 0
      %467 = vmatprep.subr.bf16.mxu0 0
      %468 = vmatpush1.bf16.msra.mxu0 0
      %469 = vmatprep.subr.bf16.mxu0 0
      %470 = vmatpush1.bf16.msra.mxu0 0
      %471 = vmatprep.subr.bf16.mxu0 0
      %472 = vmatpush1.bf16.msra.mxu0 0
      %473 = vmatprep.subr.bf16.mxu0 0
      %474 = vmatpush1.bf16.msra.mxu0 0
      %475 = vmatprep.mubr.bf16.mxu0 0
      %476 = vmatmul.mubr.bf16.gmra.mrb[0].mxu0 %v441
      %v477 = vpop.f32.mrb[0].mxu0
      %v478 = vadd.f32 0.0, %v477
      %v479 = vpop.f32.mrb[0].mxu0
      %v480 = vpop.f32.mrb[0].mxu0
      %v481 = vpop.f32.mrb[0].mxu0
      %482 = vdwg.mxu0
      %v483 = vmul.f32 %v478, %v422
      %v484 = vpack.c.bf16 %v417, %v417
      %v485 = vpack.c.bf16 %v483, %v483
      %v487 = vsel %vm418, %v484, 0
      %vm489 = vcmask 1043456
      %v491 = vsel %vm489, %v485, 0
      %493 = vmatprep.subr.bf16.mxu0 0
      %494 = vmatpush1.bf16.msra.mxu0 %v491
      %495 = vmatprep.subr.bf16.mxu0 0
      %496 = vmatpush1.bf16.msra.mxu0 0
      %497 = vmatprep.subr.bf16.mxu0 0
      %498 = vmatpush1.bf16.msra.mxu0 0
      %499 = vmatprep.subr.bf16.mxu0 0
      %500 = vmatpush1.bf16.msra.mxu0 0
      %501 = vmatprep.subr.bf16.mxu0 0
      %502 = vmatpush1.bf16.msra.mxu0 0
      %503 = vmatprep.subr.bf16.mxu0 0
      %504 = vmatpush1.bf16.msra.mxu0 0
      %505 = vmatprep.subr.bf16.mxu0 0
      %506 = vmatpush1.bf16.msra.mxu0 0
      %507 = vmatprep.subr.bf16.mxu0 0
      %508 = vmatpush1.bf16.msra.mxu0 0
      %509 = vmatprep.subr.bf16.mxu0 0
      %510 = vmatpush1.bf16.msra.mxu0 0
      %511 = vmatprep.subr.bf16.mxu0 0
      %512 = vmatpush1.bf16.msra.mxu0 0
      %513 = vmatprep.subr.bf16.mxu0 0
      %514 = vmatpush1.bf16.msra.mxu0 0
      %515 = vmatprep.subr.bf16.mxu0 0
      %516 = vmatpush1.bf16.msra.mxu0 0
      %517 = vmatprep.subr.bf16.mxu0 0
      %518 = vmatpush1.bf16.msra.mxu0 0
      %519 = vmatprep.subr.bf16.mxu0 0
      %520 = vmatpush1.bf16.msra.mxu0 0
      %521 = vmatprep.subr.bf16.mxu0 0
      %522 = vmatpush1.bf16.msra.mxu0 0
      %523 = vmatprep.subr.bf16.mxu0 0
      %524 = vmatpush1.bf16.msra.mxu0 0
      %525 = vmatprep.mubr.bf16.mxu0 0
      %526 = vmatmul.mubr.bf16.gmra.mrb[0].mxu0 %v487
      %v527 = vpop.f32.mrb[0].mxu0
      %v528 = vadd.f32 0.0, %v527
      %v529 = vpop.f32.mrb[0].mxu0
      %v530 = vpop.f32.mrb[0].mxu0
      %v531 = vpop.f32.mrb[0].mxu0
      %532 = vdwg.mxu0
      %v533 = vmul.f32 %v528, %v422
      %v534 = vld [vmem:[%s5 + $0x2] sm:$0x1]
      %v535 = vlaneseq
      %v536 = vshrl.u32 %v535, 7
      %v537 = vsub.s32 0, %v536
      %v538 = vrot.slane %v534, %v537
      %v539 = vadd.f32 %v533, %v538
      %v540 = vmax.f32 %v539, 0.0
      %v541 = vld [vmem:[%s4 + $0x20] sm:$0xf]
      %v542 = vld [vmem:[%s4 + $0x24] sm:$0xf]
      %v543 = vld [vmem:[%s4 + $0x28] sm:$0xf]
      %v544 = vld [vmem:[%s4 + $0x2c] sm:$0xf]
      %v545 = vpack.c.bf16 %v540, %v540
      %v546 = vld [vmem:[%s5 + $0x3] sm:$0x1]
      %v547 = vlaneseq
      %v548 = vshrl.u32 %v547, 7
      %v549 = vsub.s32 0, %v548
      %v550 = vrot.slane %v546, %v549
      %v555 = vunpack.c.l.b16 %v541
      %v556 = vunpack.c.l.b16 %v542
      %v557 = vunpack.c.l.b16 %v543
      %v558 = vunpack.c.l.b16 %v544
      %v559 = vpack.c.b16 %v556, %v555
      %v560 = vpack.c.b16 %v558, %v557
      %v564 = vsel %vm364, %v545, 0
      %566 = vmatprep.subr.bf16.mxu0 0
      %567 = vmatpush1.bf16.msra.mxu0 %v559
      %568 = vmatprep.subr.bf16.mxu0 0
      %569 = vmatpush1.bf16.msra.mxu0 %v560
      %570 = vmatprep.subr.bf16.mxu0 0
      %571 = vmatpush1.bf16.msra.mxu0 0
      %572 = vmatprep.subr.bf16.mxu0 0
      %573 = vmatpush1.bf16.msra.mxu0 0
      %574 = vmatprep.subr.bf16.mxu0 0
      %575 = vmatpush1.bf16.msra.mxu0 0
      %576 = vmatprep.subr.bf16.mxu0 0
      %577 = vmatpush1.bf16.msra.mxu0 0
      %578 = vmatprep.subr.bf16.mxu0 0
      %579 = vmatpush1.bf16.msra.mxu0 0
      %580 = vmatprep.subr.bf16.mxu0 0
      %581 = vmatpush1.bf16.msra.mxu0 0
      %582 = vmatprep.subr.bf16.mxu0 0
      %583 = vmatpush1.bf16.msra.mxu0 0
      %584 = vmatprep.subr.bf16.mxu0 0
      %585 = vmatpush1.bf16.msra.mxu0 0
      %586 = vmatprep.subr.bf16.mxu0 0
      %587 = vmatpush1.bf16.msra.mxu0 0
      %588 = vmatprep.subr.bf16.mxu0 0
      %589 = vmatpush1.bf16.msra.mxu0 0
      %590 = vmatprep.subr.bf16.mxu0 0
      %591 = vmatpush1.bf16.msra.mxu0 0
      %592 = vmatprep.subr.bf16.mxu0 0
      %593 = vmatpush1.bf16.msra.mxu0 0
      %594 = vmatprep.subr.bf16.mxu0 0
      %595 = vmatpush1.bf16.msra.mxu0 0
      %596 = vmatprep.subr.bf16.mxu0 0
      %597 = vmatpush1.bf16.msra.mxu0 0
      %598 = vmatprep.mubr.bf16.mxu0 0
      %599 = vmatmul.mubr.bf16.gmra.mrb[0].mxu0 %v564
      %v600 = vpop.f32.mrb[0].mxu0
      %v601 = vadd.f32 %v550, %v600
      %v602 = vpop.f32.mrb[0].mxu0
      %v603 = vpop.f32.mrb[0].mxu0
      %v604 = vpop.f32.mrb[0].mxu0
      %605 = vdwg.mxu0
      %v606 = vmax.f32 %v601, 0.0
      %608 = vrot.lane.b32.xlu0 %v408, 32
      %v609 = vpop.permute.xlu0 %608
      %v611 = vsel %vm364, %v606, %v609
      %v612 = vld [vmem:[%s4 + $0x30] sm:$0xf]
      %v613 = vld [vmem:[%s4 + $0x34] sm:$0xf]
      %v614 = vld [vmem:[%s4 + $0x38] sm:$0xf]
      %v615 = vld [vmem:[%s4 + $0x3c] sm:$0xf]
      %v616 = vld [vmem:[%s4 + $0x40] sm:$0xf]
      %v617 = vld [vmem:[%s4 + $0x44] sm:$0xf]
      %v618 = vld [vmem:[%s4 + $0x48] sm:$0xf]
      %v619 = vld [vmem:[%s4 + $0x4c] sm:$0xf]
      %v620 = vpack.c.bf16 %v611, %v611
      %v621 = vld [vmem:[%s5 + $0x4] sm:$0x1]
      %v622 = vlaneseq
      %v623 = vshrl.u32 %v622, 7
      %v624 = vsub.s32 0, %v623
      %v625 = vrot.slane %v621, %v624
      %v634 = vunpack.c.l.b16 %v612
      %v635 = vunpack.c.l.b16 %v613
      %v636 = vunpack.c.l.b16 %v614
      %v637 = vunpack.c.l.b16 %v615
      %v638 = vunpack.c.l.b16 %v616
      %v639 = vunpack.c.l.b16 %v617
      %v640 = vunpack.c.l.b16 %v618
      %v641 = vunpack.c.l.b16 %v619
      %v642 = vpack.c.b16 %v635, %v634
      %v643 = vpack.c.b16 %v637, %v636
      %v644 = vpack.c.b16 %v639, %v638
      %v645 = vpack.c.b16 %v641, %v640
      %vm650 = vcmask 523264
      %v652 = vsel %vm650, %v620, 0
      %654 = vmatprep.subr.bf16.mxu0 0
      %655 = vmatpush1.bf16.msra.mxu0 %v642
      %656 = vmatprep.subr.bf16.mxu0 0
      %657 = vmatpush1.bf16.msra.mxu0 %v643
      %658 = vmatprep.subr.bf16.mxu0 0
      %659 = vmatpush1.bf16.msra.mxu0 %v644
      %660 = vmatprep.subr.bf16.mxu0 0
      %661 = vmatpush1.bf16.msra.mxu0 %v645
      %662 = vmatprep.subr.bf16.mxu0 0
      %663 = vmatpush1.bf16.msra.mxu0 0
      %664 = vmatprep.subr.bf16.mxu0 0
      %665 = vmatpush1.bf16.msra.mxu0 0
      %666 = vmatprep.subr.bf16.mxu0 0
      %667 = vmatpush1.bf16.msra.mxu0 0
      %668 = vmatprep.subr.bf16.mxu0 0
      %669 = vmatpush1.bf16.msra.mxu0 0
      %670 = vmatprep.subr.bf16.mxu0 0
      %671 = vmatpush1.bf16.msra.mxu0 0
      %672 = vmatprep.subr.bf16.mxu0 0
      %673 = vmatpush1.bf16.msra.mxu0 0
      %674 = vmatprep.subr.bf16.mxu0 0
      %675 = vmatpush1.bf16.msra.mxu0 0
      %676 = vmatprep.subr.bf16.mxu0 0
      %677 = vmatpush1.bf16.msra.mxu0 0
      %678 = vmatprep.subr.bf16.mxu0 0
      %679 = vmatpush1.bf16.msra.mxu0 0
      %680 = vmatprep.subr.bf16.mxu0 0
      %681 = vmatpush1.bf16.msra.mxu0 0
      %682 = vmatprep.subr.bf16.mxu0 0
      %683 = vmatpush1.bf16.msra.mxu0 0
      %684 = vmatprep.subr.bf16.mxu0 0
      %685 = vmatpush1.bf16.msra.mxu0 0
      %686 = vmatprep.mubr.bf16.mxu0 0
      %687 = vmatmul.mubr.bf16.gmra.mrb[0].mxu0 %v652
      %v688 = vpop.f32.mrb[0].mxu0
      %v689 = vadd.f32 %v625, %v688
      %v690 = vpop.f32.mrb[0].mxu0
      %v691 = vpop.f32.mrb[0].mxu0
      %v692 = vpop.f32.mrb[0].mxu0
      %693 = vdwg.mxu0
      %v694 = vmax.f32 %v689, 0.0
      %v695 = vld [vmem:[%s4 + $0x50] sm:$0xf]
      %v696 = vld [vmem:[%s4 + $0x54] sm:$0xf]
      %v697 = vld [vmem:[%s4 + $0x58] sm:$0xf]
      %v698 = vld [vmem:[%s4 + $0x5c] sm:$0xf]
      %v699 = vpack.c.bf16 %v694, %v694
      %v700 = vld [vmem:[%s5 + $0x5] sm:$0x1]
      %v701 = vlaneseq
      %v702 = vshrl.u32 %v701, 7
      %v703 = vsub.s32 0, %v702
      %v704 = vrot.slane %v700, %v703
      %v709 = vunpack.c.l.b16 %v695
      %v710 = vunpack.c.l.b16 %v696
      %v711 = vunpack.c.l.b16 %v697
      %v712 = vunpack.c.l.b16 %v698
      %v713 = vpack.c.b16 %v710, %v709
      %v714 = vpack.c.b16 %v712, %v711
      %v718 = vsel %vm364, %v699, 0
      %720 = vmatprep.subr.bf16.mxu0 0
      %721 = vmatpush1.bf16.msra.mxu0 %v713
      %722 = vmatprep.subr.bf16.mxu0 0
      %723 = vmatpush1.bf16.msra.mxu0 %v714
      %724 = vmatprep.subr.bf16.mxu0 0
      %725 = vmatpush1.bf16.msra.mxu0 0
      %726 = vmatprep.subr.bf16.mxu0 0
      %727 = vmatpush1.bf16.msra.mxu0 0
      %728 = vmatprep.subr.bf16.mxu0 0
      %729 = vmatpush1.bf16.msra.mxu0 0
      %730 = vmatprep.subr.bf16.mxu0 0
      %731 = vmatpush1.bf16.msra.mxu0 0
      %732 = vmatprep.subr.bf16.mxu0 0
      %733 = vmatpush1.bf16.msra.mxu0 0
      %734 = vmatprep.subr.bf16.mxu0 0
      %735 = vmatpush1.bf16.msra.mxu0 0
      %736 = vmatprep.subr.bf16.mxu0 0
      %737 = vmatpush1.bf16.msra.mxu0 0
      %738 = vmatprep.subr.bf16.mxu0 0
      %739 = vmatpush1.bf16.msra.mxu0 0
      %740 = vmatprep.subr.bf16.mxu0 0
      %741 = vmatpush1.bf16.msra.mxu0 0
      %742 = vmatprep.subr.bf16.mxu0 0
      %743 = vmatpush1.bf16.msra.mxu0 0
      %744 = vmatprep.subr.bf16.mxu0 0
      %745 = vmatpush1.bf16.msra.mxu0 0
      %746 = vmatprep.subr.bf16.mxu0 0
      %747 = vmatpush1.bf16.msra.mxu0 0
      %748 = vmatprep.subr.bf16.mxu0 0
      %749 = vmatpush1.bf16.msra.mxu0 0
      %750 = vmatprep.subr.bf16.mxu0 0
      %751 = vmatpush1.bf16.msra.mxu0 0
      %752 = vmatprep.mubr.bf16.mxu0 0
      %753 = vmatmul.mubr.bf16.gmra.mrb[0].mxu0 %v718
      %v754 = vpop.f32.mrb[0].mxu0
      %v755 = vadd.f32 %v704, %v754
      %v756 = vpop.f32.mrb[0].mxu0
      %v757 = vpop.f32.mrb[0].mxu0
      %v758 = vpop.f32.mrb[0].mxu0
      %759 = vdwg.mxu0
      %v760 = vmax.f32 %v755, 0.0
      %v761 = vld [vmem:[%s4 + $0x60] sm:$0xf]
      %v762 = vld [vmem:[%s4 + $0x64] sm:$0xf]
      %v763 = vld [vmem:[%s4 + $0x68] sm:$0xf]
      %v764 = vld [vmem:[%s4 + $0x6c] sm:$0xf]
      %v765 = vpack.c.bf16 %v760, %v760
      %v766 = vld [vmem:[%s5 + $0x6] sm:$0x1]
      %v767 = vlaneseq
      %v768 = vshrl.u32 %v767, 7
      %v769 = vsub.s32 0, %v768
      %v770 = vrot.slane %v766, %v769
      %v775 = vunpack.c.l.b16 %v761
      %v776 = vunpack.c.l.b16 %v762
      %v777 = vunpack.c.l.b16 %v763
      %v778 = vunpack.c.l.b16 %v764
      %v779 = vpack.c.b16 %v776, %v775
      %v780 = vpack.c.b16 %v778, %v777
      %v784 = vsel %vm364, %v765, 0
      %786 = vmatprep.subr.bf16.mxu0 0
      %787 = vmatpush1.bf16.msra.mxu0 %v779
      %788 = vmatprep.subr.bf16.mxu0 0
      %789 = vmatpush1.bf16.msra.mxu0 %v780
      %790 = vmatprep.subr.bf16.mxu0 0
      %791 = vmatpush1.bf16.msra.mxu0 0
      %792 = vmatprep.subr.bf16.mxu0 0
      %793 = vmatpush1.bf16.msra.mxu0 0
      %794 = vmatprep.subr.bf16.mxu0 0
      %795 = vmatpush1.bf16.msra.mxu0 0
      %796 = vmatprep.subr.bf16.mxu0 0
      %797 = vmatpush1.bf16.msra.mxu0 0
      %798 = vmatprep.subr.bf16.mxu0 0
      %799 = vmatpush1.bf16.msra.mxu0 0
      %800 = vmatprep.subr.bf16.mxu0 0
      %801 = vmatpush1.bf16.msra.mxu0 0
      %802 = vmatprep.subr.bf16.mxu0 0
      %803 = vmatpush1.bf16.msra.mxu0 0
      %804 = vmatprep.subr.bf16.mxu0 0
      %805 = vmatpush1.bf16.msra.mxu0 0
      %806 = vmatprep.subr.bf16.mxu0 0
      %807 = vmatpush1.bf16.msra.mxu0 0
      %808 = vmatprep.subr.bf16.mxu0 0
      %809 = vmatpush1.bf16.msra.mxu0 0
      %810 = vmatprep.subr.bf16.mxu0 0
      %811 = vmatpush1.bf16.msra.mxu0 0
      %812 = vmatprep.subr.bf16.mxu0 0
      %813 = vmatpush1.bf16.msra.mxu0 0
      %814 = vmatprep.subr.bf16.mxu0 0
      %815 = vmatpush1.bf16.msra.mxu0 0
      %816 = vmatprep.subr.bf16.mxu0 0
      %817 = vmatpush1.bf16.msra.mxu0 0
      %818 = vmatprep.mubr.bf16.mxu0 0
      %819 = vmatmul.mubr.bf16.gmra.mrb[0].mxu0 %v784
      %v820 = vpop.f32.mrb[0].mxu0
      %v821 = vadd.f32 %v770, %v820
      %v822 = vpop.f32.mrb[0].mxu0
      %v823 = vpop.f32.mrb[0].mxu0
      %v824 = vpop.f32.mrb[0].mxu0
      %825 = vdwg.mxu0
      %v826 = vld [vmem:[%s4 + $0x70] sm:$0xf]
      %v827 = vld [vmem:[%s4 + $0x74] sm:$0xf]
      %v828 = vld [vmem:[%s4 + $0x78] sm:$0xf]
      %v829 = vld [vmem:[%s4 + $0x7c] sm:$0xf]
      %v830 = vld [vmem:[%s5 + $0x7] sm:$0x1]
      %v831 = vlaneseq
      %v832 = vshrl.u32 %v831, 7
      %v833 = vsub.s32 0, %v832
      %v834 = vrot.slane %v830, %v833
      %v839 = vunpack.c.l.b16 %v826
      %v840 = vunpack.c.l.b16 %v827
      %v841 = vunpack.c.l.b16 %v828
      %v842 = vunpack.c.l.b16 %v829
      %v843 = vpack.c.b16 %v840, %v839
      %v844 = vpack.c.b16 %v842, %v841
      %847 = vmatprep.subr.bf16.mxu0 0
      %848 = vmatpush1.bf16.msra.mxu0 %v843
      %849 = vmatprep.subr.bf16.mxu0 0
      %850 = vmatpush1.bf16.msra.mxu0 %v844
      %851 = vmatprep.subr.bf16.mxu0 0
      %852 = vmatpush1.bf16.msra.mxu0 0
      %853 = vmatprep.subr.bf16.mxu0 0
      %854 = vmatpush1.bf16.msra.mxu0 0
      %855 = vmatprep.subr.bf16.mxu0 0
      %856 = vmatpush1.bf16.msra.mxu0 0
      %857 = vmatprep.subr.bf16.mxu0 0
      %858 = vmatpush1.bf16.msra.mxu0 0
      %859 = vmatprep.subr.bf16.mxu0 0
      %860 = vmatpush1.bf16.msra.mxu0 0
      %861 = vmatprep.subr.bf16.mxu0 0
      %862 = vmatpush1.bf16.msra.mxu0 0
      %863 = vmatprep.subr.bf16.mxu0 0
      %864 = vmatpush1.bf16.msra.mxu0 0
      %865 = vmatprep.subr.bf16.mxu0 0
      %866 = vmatpush1.bf16.msra.mxu0 0
      %867 = vmatprep.subr.bf16.mxu0 0
      %868 = vmatpush1.bf16.msra.mxu0 0
      %869 = vmatprep.subr.bf16.mxu0 0
      %870 = vmatpush1.bf16.msra.mxu0 0
      %871 = vmatprep.subr.bf16.mxu0 0
      %872 = vmatpush1.bf16.msra.mxu0 0
      %873 = vmatprep.subr.bf16.mxu0 0
      %874 = vmatpush1.bf16.msra.mxu0 0
      %875 = vmatprep.subr.bf16.mxu0 0
      %876 = vmatpush1.bf16.msra.mxu0 0
      %877 = vmatprep.subr.bf16.mxu0 0
      %878 = vmatpush1.bf16.msra.mxu0 0
      %879 = vmatprep.mubr.bf16.mxu0 0
      %880 = vmatmul.mubr.bf16.gmra.mrb[0].mxu0 %v784
      %v881 = vpop.f32.mrb[0].mxu0
      %v882 = vadd.f32 %v834, %v881
      %v883 = vpop.f32.mrb[0].mxu0
      %v884 = vpop.f32.mrb[0].mxu0
      %v885 = vpop.f32.mrb[0].mxu0
      %886 = vdwg.mxu0
      %v887 = vmul.f32 %v882, 1.442695
      %v888 = vpow.pop %v887
      %v889 = vld [vmem:[%s276] sm:$0xff]
      %v890 = vmul.f32 %v888, %v889
      %v891 = vadd.f32 %v821, %v890
      %v892 = vmul.f32 %v889, -0.5
      %v893 = vmul.f32 %v892, %v889
      %v894 = vsub.f32 %v893, %v882
      %v895 = vsub.f32 %v894, 0.9189385
      %v896 = vmax.f32 %v891, -1.0
      %v897 = vmin.f32 %v896, 1.0
      %899 = vrot.lane.b32.xlu0 %v895, 32
      %v900 = vpop.permute.xlu0 %899
      %903 = vrot.lane.b32.xlu0 %v821, 64
      %v904 = vpop.permute.xlu0 %903
      %907 = vrot.lane.b32.xlu0 %v888, 96
      %v908 = vpop.permute.xlu0 %907
      %v910 = vsel %vm364, %v897, %v900
      %v911 = vsel %vm650, %v910, %v904
      %vm912 = vcmask 785408
      %v913 = vsel %vm912, %v911, %v908
      %914 = vst [vmem:[%s280] sm:$0xff] %v913
      %p915 = scmp.lt.s32.totalorder %s17, 3
      %s916 = scalar_select %p915, %s17, 3
      %s917 = smul.addr %s916, 8
      %s918 = scalar_lea.vmem %s6, %s917
      // Predicated region
      $region45: #{graph_actor_forward.1} parent=43 // pred_check
        %p919 = pneg %p176
      $region46: #{graph_actor_forward.1} parent=43 // pred_check_branch
        %921 = sbr.rel (%p919) target = $region48
      $region47: #{graph_actor_forward.1} parent=43 // pred_region
        _
      $region48: #{graph_actor_forward.1} parent=43 // pred_fallthru
        _
    $region44: #{graph_actor_forward.1} parent=5 // pred_fallthru
      _
    %p922 = scmp.le.s32.totalorder 2, %s12
    // Predicated region
    $region49: #{graph_actor_forward.1} parent=5 // pred_check
      %p923 = pneg %p922
    $region50: #{graph_actor_forward.1} parent=5 // pred_check_branch
      %925 = sbr.rel (%p923) target = $region52
    $region51: #{graph_actor_forward.1} parent=5 // pred_region
      %s926 = ssub.s32 %s12, 2
      // Predicated region
      $region53: #{graph_actor_forward.1} parent=51 // pred_check
        %p927 = pneg %p182
      $region54: #{graph_actor_forward.1} parent=51 // pred_check_branch
        %929 = sbr.rel (%p927) target = $region56
      $region55: #{graph_actor_forward.1} parent=51 // pred_region
        %p930 = scmp.lt.s32.totalorder %s18, 3
        %s931 = scalar_select %p930, %s18, 3
        %s932 = smul.addr %s931, 8
        %s933 = scalar_lea.vmem %s6, %s932
      $region56: #{graph_actor_forward.1} parent=51 // pred_fallthru
        _
    $region52: #{graph_actor_forward.1} parent=5 // pred_fallthru
      _
  $region6: #{graph_actor_forward.1} parent=0 // loop_footer
    %s16 = sadd.s32 1, %s12
  $region7: #{graph_actor_forward.1} parent=0 // loop_footer_branch
    %11 = sbr.rel target = $region3
  $region8: #{graph_actor_forward.1} parent=0 // loop_exit
    _

</llo_original>
